<compile_context>
chip_gen: v7x
topology: tpu7x:2x2x1
jax: 0.10.0
libtpu: 0.0.40
codegen_flags: <defaults>
</compile_context>

<pallas_src>
import jax
import jax.numpy as jnp
from jax.experimental import pallas as pl
from jax.experimental.pallas import tpu as pltpu

IN_DIM = 100
NUM_CLASSES = 10
NEG_SLOPE = 0.2

K_PAD = 128    # IN_DIM padded to lane width
N_PAD = 128    # NUM_CLASSES padded to lane width (lane-dense output store)
H1, H2, H3 = 32, 16, 8


def _round_up(x, m):
    return ((x + m - 1) // m) * m


def _leaky_relu(h):
    return jnp.where(h > 0, h, NEG_SLOPE * h)


def fnn_kernel(x_ref,
               w1_ref, b1_ref,
               w2_ref, b2_ref,
               w3_ref, b3_ref,
               w4_ref, b4_ref,
               o_ref):
    """All four linears + LeakyReLU fused, one batch tile per grid step.

    x/wN may be bf16; every jnp.dot accumulates in f32 on the MXU, bias add and
    LeakyReLU run in f32 on the VPU, activations are cast back to the weight
    dtype only to feed the next matmul.
    """
    x = x_ref[...]                                    # (tile_b, K_PAD)
    h = _leaky_relu(
        jnp.dot(x, w1_ref[...], preferred_element_type=jnp.float32) + b1_ref[...])
    h = h.astype(w2_ref.dtype)
    h = _leaky_relu(
        jnp.dot(h, w2_ref[...], preferred_element_type=jnp.float32) + b2_ref[...])
    h = h.astype(w3_ref.dtype)
    h = _leaky_relu(
        jnp.dot(h, w3_ref[...], preferred_element_type=jnp.float32) + b3_ref[...])
    h = h.astype(w4_ref.dtype)
    out = jnp.dot(h, w4_ref[...], preferred_element_type=jnp.float32) + b4_ref[...]
    o_ref[...] = out.astype(o_ref.dtype)              # lane-dense (tile_b, 128) store


def fnn_forward(x, params, *, tile_b=1024, compute_dtype=jnp.bfloat16):
    """x: (B, IN_DIM) f32.  params: dict of w1..w4 (in,out) and b1..b4 (1,out), f32.

    Padding (K 100->128, N 10->128, batch to a tile multiple) happens once here,
    outside the kernel, with zeros; the output is sliced back to (B, 10).
    """
    B, D = x.shape
    assert D == IN_DIM

    # Clamp the tile to the (8-rounded) batch so tiny batches still compile cleanly.
    tile_b = min(tile_b, _round_up(B, 8))
    tile_b = _round_up(tile_b, 8)
    Bp = _round_up(B, tile_b)

    # --- one-time wrapper-side layout plumbing (all zero padding) ---
    x_pad = jnp.pad(x, ((0, Bp - B), (0, K_PAD - D))).astype(compute_dtype)

    w1 = jnp.pad(params["w1"], ((0, K_PAD - IN_DIM), (0, 0))).astype(compute_dtype)
    w2 = params["w2"].astype(compute_dtype)
    w3 = params["w3"].astype(compute_dtype)
    w4 = jnp.pad(params["w4"], ((0, 0), (0, N_PAD - NUM_CLASSES))).astype(compute_dtype)
    # Biases stay f32: the bias add / LeakyReLU path is f32 on every generation.
    b1 = params["b1"].astype(jnp.float32)
    b2 = params["b2"].astype(jnp.float32)
    b3 = params["b3"].astype(jnp.float32)
    b4 = jnp.pad(params["b4"], ((0, 0), (0, N_PAD - NUM_CLASSES))).astype(jnp.float32)

    # Whole-array, constant-index BlockSpecs -> weights/biases stay resident in VMEM
    # across all grid steps (no re-DMA when the block index does not change).
    full = lambda arr: pl.BlockSpec(arr.shape, lambda i: (0, 0))

    out = pl.pallas_call(
        fnn_kernel,
        out_shape=jax.ShapeDtypeStruct((Bp, N_PAD), jnp.float32),
        grid_spec=pltpu.PrefetchScalarGridSpec(
            num_scalar_prefetch=0,
            grid=(Bp // tile_b,),
            in_specs=[
                pl.BlockSpec((tile_b, K_PAD), lambda i: (i, 0)),
                full(w1), full(b1),
                full(w2), full(b2),
                full(w3), full(b3),
                full(w4), full(b4),
            ],
            out_specs=pl.BlockSpec((tile_b, N_PAD), lambda i: (i, 0)),
        ),
        compiler_params=pltpu.CompilerParams(
            dimension_semantics=("parallel",)),   # megacore-shards the batch axis on v7x
    )(x_pad, w1, b1, w2, b2, w3, b3, w4, b4)

    return out[:B, :NUM_CLASSES]


def init_params(key):
    """nn.Linear default init: U(-1/sqrt(fan_in), 1/sqrt(fan_in)).
    Weights stored transposed relative to PyTorch: (in_features, out_features)."""
    dims = [(IN_DIM, H1), (H1, H2), (H2, H3), (H3, NUM_CLASSES)]
    params = {}
    keys = jax.random.split(key, 2 * len(dims))
    for idx, (fin, fout) in enumerate(dims):
        bound = 1.0 / (fin ** 0.5)
        params[f"w{idx + 1}"] = jax.random.uniform(
            keys[2 * idx], (fin, fout), jnp.float32, -bound, bound)
        params[f"b{idx + 1}"] = jax.random.uniform(
            keys[2 * idx + 1], (1, fout), jnp.float32, -bound, bound)
    return params


def fnn_reference(x, params):
    h = x
    for i, act in [(1, True), (2, True), (3, True), (4, False)]:
        h = h @ params[f"w{i}"] + params[f"b{i}"]
        if act:
            h = jnp.where(h > 0, h, NEG_SLOPE * h)
    return h


if __name__ == "__main__":
    key = jax.random.PRNGKey(0)
    kx, kp = jax.random.split(key)
    params = init_params(kp)

    # Small, deterministic inputs consistent with the module (in_dim=100).
    B = 16
    x = jax.random.normal(kx, (B, IN_DIM), jnp.float32)
    ref = fnn_reference(x, params)

    # 1) exact-dtype path (f32 compute): tight tolerance vs pure-JAX reference.
    out_f32 = jax.block_until_ready(
        fnn_forward(x, params, compute_dtype=jnp.float32))
    assert out_f32.shape == (B, NUM_CLASSES)
    assert jnp.allclose(out_f32, ref, atol=1e-5, rtol=1e-5), "f32 mismatch vs reference"

    # 2) default fast path (bf16 inputs/weights, f32 accumulation): loose tolerance.
    out_bf16 = jax.block_until_ready(fnn_forward(x, params))
    assert out_bf16.shape == (B, NUM_CLASSES)
    assert jnp.allclose(out_bf16, ref, atol=5e-2, rtol=5e-2), "bf16 mismatch vs reference"

    # 3) batch not a multiple of the tile -> exercises wrapper-side batch padding.
    B2 = 13
    x2 = jax.random.normal(jax.random.PRNGKey(1), (B2, IN_DIM), jnp.float32)
    out2 = jax.block_until_ready(fnn_forward(x2, params, compute_dtype=jnp.float32))
    assert out2.shape == (B2, NUM_CLASSES)
    assert jnp.allclose(out2, fnn_reference(x2, params), atol=1e-5, rtol=1e-5), \
        "padded-batch mismatch vs reference"

    print("KERNEL_OK")
</pallas_src>

<mosaic_0001>
module attributes {stable_mosaic.version = 11 : i64} {
  func.func @fnn_kernel(%arg0: i32, %arg1: memref<16x128xf32, #tpu.memory_space<vmem>>, %arg2: memref<128x32xf32, #tpu.memory_space<vmem>>, %arg3: memref<1x32xf32, #tpu.memory_space<vmem>>, %arg4: memref<32x16xf32, #tpu.memory_space<vmem>>, %arg5: memref<1x16xf32, #tpu.memory_space<vmem>>, %arg6: memref<16x8xf32, #tpu.memory_space<vmem>>, %arg7: memref<1x8xf32, #tpu.memory_space<vmem>>, %arg8: memref<8x128xf32, #tpu.memory_space<vmem>>, %arg9: memref<1x128xf32, #tpu.memory_space<vmem>>, %arg10: memref<16x128xf32, #tpu.memory_space<vmem>>) attributes {dimension_semantics = [#tpu.dimension_semantics<parallel>], iteration_bounds = array<i64: 1>, scalar_prefetch = 0 : i64, scratch_operands = 0 : i64, tpu.core_type = #tpu.core_type<tc>, window_params = [{transform_indices = @transform_0, window_bounds = array<i64: 16, 128>}, {pipeline_mode = #tpu.pipeline_mode<synchronous>, transform_indices = @transform_1, window_bounds = array<i64: 128, 32>}, {pipeline_mode = #tpu.pipeline_mode<synchronous>, transform_indices = @transform_2, window_bounds = array<i64: 1, 32>}, {pipeline_mode = #tpu.pipeline_mode<synchronous>, transform_indices = @transform_3, window_bounds = array<i64: 32, 16>}, {pipeline_mode = #tpu.pipeline_mode<synchronous>, transform_indices = @transform_4, window_bounds = array<i64: 1, 16>}, {pipeline_mode = #tpu.pipeline_mode<synchronous>, transform_indices = @transform_5, window_bounds = array<i64: 16, 8>}, {pipeline_mode = #tpu.pipeline_mode<synchronous>, transform_indices = @transform_6, window_bounds = array<i64: 1, 8>}, {pipeline_mode = #tpu.pipeline_mode<synchronous>, transform_indices = @transform_7, window_bounds = array<i64: 8, 128>}, {pipeline_mode = #tpu.pipeline_mode<synchronous>, transform_indices = @transform_8, window_bounds = array<i64: 1, 128>}, {transform_indices = @transform_9, window_bounds = array<i64: 16, 128>}]} {
    %c0 = arith.constant 0 : index
    %c0_0 = arith.constant 0 : index
    %0 = vector.load %arg1[%c0, %c0_0] : memref<16x128xf32, #tpu.memory_space<vmem>>, vector<16x128xf32>
    %c0_1 = arith.constant 0 : index
    %c0_2 = arith.constant 0 : index
    %1 = vector.load %arg2[%c0_1, %c0_2] : memref<128x32xf32, #tpu.memory_space<vmem>>, vector<128x32xf32>
    %cst = arith.constant dense<0.000000e+00> : vector<16x32xf32>
    %2 = tpu.matmul %0, %1, %cst {dimension_numbers = #tpu.dot_dimension_numbers<[1], [0], [0], [1], [0, 0, 1, 1], [], []>} : vector<16x128xf32>, vector<128x32xf32>, vector<16x32xf32> -> vector<16x32xf32>
    %c0_3 = arith.constant 0 : index
    %c0_4 = arith.constant 0 : index
    %3 = vector.load %arg3[%c0_3, %c0_4] : memref<1x32xf32, #tpu.memory_space<vmem>>, vector<1x32xf32>
    %4 = vector.broadcast %3 : vector<1x32xf32> to vector<16x32xf32>
    %5 = arith.addf %2, %4 : vector<16x32xf32>
    %cst_5 = arith.constant 0.000000e+00 : f32
    %6 = vector.broadcast %cst_5 : f32 to vector<16x32xf32>
    %7 = arith.cmpf ogt, %5, %6 : vector<16x32xf32>
    %cst_6 = arith.constant 2.000000e-01 : f32
    %8 = vector.broadcast %cst_6 : f32 to vector<16x32xf32>
    %9 = arith.mulf %8, %5 : vector<16x32xf32>
    %10 = arith.select %7, %5, %9 : vector<16x32xi1>, vector<16x32xf32>
    %c0_7 = arith.constant 0 : index
    %c0_8 = arith.constant 0 : index
    %11 = vector.load %arg4[%c0_7, %c0_8] : memref<32x16xf32, #tpu.memory_space<vmem>>, vector<32x16xf32>
    %cst_9 = arith.constant dense<0.000000e+00> : vector<16x16xf32>
    %12 = tpu.matmul %10, %11, %cst_9 {dimension_numbers = #tpu.dot_dimension_numbers<[1], [0], [0], [1], [0, 0, 1, 1], [], []>} : vector<16x32xf32>, vector<32x16xf32>, vector<16x16xf32> -> vector<16x16xf32>
    %c0_10 = arith.constant 0 : index
    %c0_11 = arith.constant 0 : index
    %13 = vector.load %arg5[%c0_10, %c0_11] : memref<1x16xf32, #tpu.memory_space<vmem>>, vector<1x16xf32>
    %14 = vector.broadcast %13 : vector<1x16xf32> to vector<16x16xf32>
    %15 = arith.addf %12, %14 : vector<16x16xf32>
    %cst_12 = arith.constant 0.000000e+00 : f32
    %16 = vector.broadcast %cst_12 : f32 to vector<16x16xf32>
    %17 = arith.cmpf ogt, %15, %16 : vector<16x16xf32>
    %cst_13 = arith.constant 2.000000e-01 : f32
    %18 = vector.broadcast %cst_13 : f32 to vector<16x16xf32>
    %19 = arith.mulf %18, %15 : vector<16x16xf32>
    %20 = arith.select %17, %15, %19 : vector<16x16xi1>, vector<16x16xf32>
    %c0_14 = arith.constant 0 : index
    %c0_15 = arith.constant 0 : index
    %21 = vector.load %arg6[%c0_14, %c0_15] : memref<16x8xf32, #tpu.memory_space<vmem>>, vector<16x8xf32>
    %cst_16 = arith.constant dense<0.000000e+00> : vector<16x8xf32>
    %22 = tpu.matmul %20, %21, %cst_16 {dimension_numbers = #tpu.dot_dimension_numbers<[1], [0], [0], [1], [0, 0, 1, 1], [], []>} : vector<16x16xf32>, vector<16x8xf32>, vector<16x8xf32> -> vector<16x8xf32>
    %c0_17 = arith.constant 0 : index
    %c0_18 = arith.constant 0 : index
    %23 = vector.load %arg7[%c0_17, %c0_18] : memref<1x8xf32, #tpu.memory_space<vmem>>, vector<1x8xf32>
    %24 = vector.broadcast %23 : vector<1x8xf32> to vector<16x8xf32>
    %25 = arith.addf %22, %24 : vector<16x8xf32>
    %cst_19 = arith.constant 0.000000e+00 : f32
    %26 = vector.broadcast %cst_19 : f32 to vector<16x8xf32>
    %27 = arith.cmpf ogt, %25, %26 : vector<16x8xf32>
    %cst_20 = arith.constant 2.000000e-01 : f32
    %28 = vector.broadcast %cst_20 : f32 to vector<16x8xf32>
    %29 = arith.mulf %28, %25 : vector<16x8xf32>
    %30 = arith.select %27, %25, %29 : vector<16x8xi1>, vector<16x8xf32>
    %c0_21 = arith.constant 0 : index
    %c0_22 = arith.constant 0 : index
    %31 = vector.load %arg8[%c0_21, %c0_22] : memref<8x128xf32, #tpu.memory_space<vmem>>, vector<8x128xf32>
    %cst_23 = arith.constant dense<0.000000e+00> : vector<16x128xf32>
    %32 = tpu.matmul %30, %31, %cst_23 {dimension_numbers = #tpu.dot_dimension_numbers<[1], [0], [0], [1], [0, 0, 1, 1], [], []>} : vector<16x8xf32>, vector<8x128xf32>, vector<16x128xf32> -> vector<16x128xf32>
    %c0_24 = arith.constant 0 : index
    %c0_25 = arith.constant 0 : index
    %33 = vector.load %arg9[%c0_24, %c0_25] : memref<1x128xf32, #tpu.memory_space<vmem>>, vector<1x128xf32>
    %34 = vector.broadcast %33 : vector<1x128xf32> to vector<16x128xf32>
    %35 = arith.addf %32, %34 : vector<16x128xf32>
    %c0_26 = arith.constant 0 : index
    %c0_27 = arith.constant 0 : index
    %36 = vector.load %arg10[%c0_26, %c0_27] : memref<16x128xf32, #tpu.memory_space<vmem>>, vector<16x128xf32>
    tpu.vector_store %arg10[%c0_26, %c0_27], %35 {strides = array<i32>} : memref<16x128xf32, #tpu.memory_space<vmem>>, vector<16x128xf32>,
    return
  }
  func.func @transform_0(%arg0: i32) -> (i32, i32) {
    %c0_i32 = arith.constant 0 : i32
    %c0_i32_0 = arith.constant 0 : i32
    return %arg0, %c0_i32 : i32, i32
  }
  func.func @transform_1(%arg0: i32) -> (i32, i32) {
    %c0_i32 = arith.constant 0 : i32
    %c0_i32_0 = arith.constant 0 : i32
    %c0_i32_1 = arith.constant 0 : i32
    return %c0_i32, %c0_i32_0 : i32, i32
  }
  func.func @transform_2(%arg0: i32) -> (i32, i32) {
    %c0_i32 = arith.constant 0 : i32
    %c0_i32_0 = arith.constant 0 : i32
    %c0_i32_1 = arith.constant 0 : i32
    return %c0_i32, %c0_i32_0 : i32, i32
  }
  func.func @transform_3(%arg0: i32) -> (i32, i32) {
    %c0_i32 = arith.constant 0 : i32
    %c0_i32_0 = arith.constant 0 : i32
    %c0_i32_1 = arith.constant 0 : i32
    return %c0_i32, %c0_i32_0 : i32, i32
  }
  func.func @transform_4(%arg0: i32) -> (i32, i32) {
    %c0_i32 = arith.constant 0 : i32
    %c0_i32_0 = arith.constant 0 : i32
    %c0_i32_1 = arith.constant 0 : i32
    return %c0_i32, %c0_i32_0 : i32, i32
  }
  func.func @transform_5(%arg0: i32) -> (i32, i32) {
    %c0_i32 = arith.constant 0 : i32
    %c0_i32_0 = arith.constant 0 : i32
    %c0_i32_1 = arith.constant 0 : i32
    return %c0_i32, %c0_i32_0 : i32, i32
  }
  func.func @transform_6(%arg0: i32) -> (i32, i32) {
    %c0_i32 = arith.constant 0 : i32
    %c0_i32_0 = arith.constant 0 : i32
    %c0_i32_1 = arith.constant 0 : i32
    return %c0_i32, %c0_i32_0 : i32, i32
  }
  func.func @transform_7(%arg0: i32) -> (i32, i32) {
    %c0_i32 = arith.constant 0 : i32
    %c0_i32_0 = arith.constant 0 : i32
    %c0_i32_1 = arith.constant 0 : i32
    return %c0_i32, %c0_i32_0 : i32, i32
  }
  func.func @transform_8(%arg0: i32) -> (i32, i32) {
    %c0_i32 = arith.constant 0 : i32
    %c0_i32_0 = arith.constant 0 : i32
    %c0_i32_1 = arith.constant 0 : i32
    return %c0_i32, %c0_i32_0 : i32, i32
  }
  func.func @transform_9(%arg0: i32) -> (i32, i32) {
    %c0_i32 = arith.constant 0 : i32
    %c0_i32_0 = arith.constant 0 : i32
    return %arg0, %c0_i32 : i32, i32
  }
}

</mosaic_0001>

<llo_original>
// kernel: tpu_custom_call.1
$region0: #{tpu_custom_call.1}
  #allocation0 [shape = 'u32[]', space=smem, size = 0x4, offset = 0x4, fixed_abs, tag = 'smem constant byte address 0x4 - core index']
  #allocation1 [shape = 'u32[144,128]{1,0:T(1,128)}', space=vmem, size = 0x12000, scoped, tag = 'internal scratch']
  %s0 = inlined_call_operand.vmem [shape: f32[16,128], index: 0, kind: input, shape index: {}]
  %s1 = inlined_call_operand.vmem [shape: f32[128,32], index: 1, kind: input, shape index: {}]
  %s2 = inlined_call_operand.vmem [shape: f32[1,32], index: 2, kind: input, shape index: {}]
  %s3 = inlined_call_operand.vmem [shape: f32[32,16], index: 3, kind: input, shape index: {}]
  %s4 = inlined_call_operand.vmem [shape: f32[1,16], index: 4, kind: input, shape index: {}]
  %s5 = inlined_call_operand.vmem [shape: f32[16,8], index: 5, kind: input, shape index: {}]
  %s6 = inlined_call_operand.vmem [shape: f32[1,8], index: 6, kind: input, shape index: {}]
  %s7 = inlined_call_operand.vmem [shape: f32[8,128], index: 7, kind: input, shape index: {}]
  %s8 = inlined_call_operand.vmem [shape: f32[1,128], index: 8, kind: input, shape index: {}]
  %s9 = inlined_call_operand.hbm [shape: f32[16,128], index: 9, kind: output, shape index: {}]
  %s10 = sld [smem:[#allocation0]]
  $region46: #{tpu_custom_call.1} parent=0
    _
  %s12 = ssub.s32 1, %s10
  %s13 = scalar_select 0, %s12, %s10
  $region1: #{tpu_custom_call.1} parent=0
    #allocation2 [shape = 'u8[8192]{0}', space=vmem, size = 0x2000, scoped, tag = 'output window, operand 0, single buffered']
    #allocation3 [shape = 's32[1]{0}', space=sflag, size = 0x4, scoped, tag = 'scoped memory for tpu_custom_call.1']
    %14 = vsyncpa [#allocation3], 0
    // Predicated region
    $region2: #{tpu_custom_call.1} parent=1 // pred_check
      _
    $region3: #{tpu_custom_call.1} parent=1 // pred_check_branch
      %16 = sbr.rel (0) target = $region5
    $region4: #{tpu_custom_call.1} parent=1 // pred_region
      _
    $region5: #{tpu_custom_call.1} parent=1 // pred_fallthru
      _
    // Predicated region
    $region6: #{tpu_custom_call.1} parent=1 // pred_check
      _
    $region7: #{tpu_custom_call.1} parent=1 // pred_check_branch
      %18 = sbr.rel (0) target = $region9
    $region8: #{tpu_custom_call.1} parent=1 // pred_region
      _
    $region9: #{tpu_custom_call.1} parent=1 // pred_fallthru
      _
    // Predicated region
    $region10: #{tpu_custom_call.1} parent=1 // pred_check
      _
    $region11: #{tpu_custom_call.1} parent=1 // pred_check_branch
      %20 = sbr.rel (0) target = $region13
    $region12: #{tpu_custom_call.1} parent=1 // pred_region
      _
    $region13: #{tpu_custom_call.1} parent=1 // pred_fallthru
      _
    // Predicated region
    $region14: #{tpu_custom_call.1} parent=1 // pred_check
      _
    $region15: #{tpu_custom_call.1} parent=1 // pred_check_branch
      %22 = sbr.rel (0) target = $region17
    $region16: #{tpu_custom_call.1} parent=1 // pred_region
      _
    $region17: #{tpu_custom_call.1} parent=1 // pred_fallthru
      _
    // Predicated region
    $region18: #{tpu_custom_call.1} parent=1 // pred_check
      _
    $region19: #{tpu_custom_call.1} parent=1 // pred_check_branch
      %24 = sbr.rel (0) target = $region21
    $region20: #{tpu_custom_call.1} parent=1 // pred_region
      _
    $region21: #{tpu_custom_call.1} parent=1 // pred_fallthru
      _
    // Predicated region
    $region22: #{tpu_custom_call.1} parent=1 // pred_check
      _
    $region23: #{tpu_custom_call.1} parent=1 // pred_check_branch
      %26 = sbr.rel (0) target = $region25
    $region24: #{tpu_custom_call.1} parent=1 // pred_region
      _
    $region25: #{tpu_custom_call.1} parent=1 // pred_fallthru
      _
    // Predicated region
    $region26: #{tpu_custom_call.1} parent=1 // pred_check
      _
    $region27: #{tpu_custom_call.1} parent=1 // pred_check_branch
      %28 = sbr.rel (0) target = $region29
    $region28: #{tpu_custom_call.1} parent=1 // pred_region
      _
    $region29: #{tpu_custom_call.1} parent=1 // pred_fallthru
      _
    // Predicated region
    $region30: #{tpu_custom_call.1} parent=1 // pred_check
      _
    $region31: #{tpu_custom_call.1} parent=1 // pred_check_branch
      %30 = sbr.rel (0) target = $region33
    $region32: #{tpu_custom_call.1} parent=1 // pred_region
      _
    $region33: #{tpu_custom_call.1} parent=1 // pred_fallthru
      _
    // Predicated region
    $region34: #{tpu_custom_call.1} parent=1 // pred_check
      _
    $region35: #{tpu_custom_call.1} parent=1 // pred_check_branch
      %32 = sbr.rel (0) target = $region37
    $region36: #{tpu_custom_call.1} parent=1 // pred_region
      _
    $region37: #{tpu_custom_call.1} parent=1 // pred_fallthru
      _
    %v33 = vld [vmem:[%s0] sm:$0xff]
    %v34 = vld [vmem:[%s0 + $0x8] sm:$0xff]
    %v35 = vld [vmem:[%s1] sm:$0xff]
    %v36 = vld [vmem:[%s1 + $0x8] sm:$0xff]
    %v37 = vld [vmem:[%s1 + $0x10] sm:$0xff]
    %v38 = vld [vmem:[%s1 + $0x18] sm:$0xff]
    %v39 = vld [vmem:[%s1 + $0x20] sm:$0xff]
    %v40 = vld [vmem:[%s1 + $0x28] sm:$0xff]
    %v41 = vld [vmem:[%s1 + $0x30] sm:$0xff]
    %v42 = vld [vmem:[%s1 + $0x38] sm:$0xff]
    %v43 = vld [vmem:[%s1 + $0x40] sm:$0xff]
    %v44 = vld [vmem:[%s1 + $0x48] sm:$0xff]
    %v45 = vld [vmem:[%s1 + $0x50] sm:$0xff]
    %v46 = vld [vmem:[%s1 + $0x58] sm:$0xff]
    %v47 = vld [vmem:[%s1 + $0x60] sm:$0xff]
    %v48 = vld [vmem:[%s1 + $0x68] sm:$0xff]
    %v49 = vld [vmem:[%s1 + $0x70] sm:$0xff]
    %v50 = vld [vmem:[%s1 + $0x78] sm:$0xff]
    %v51 = vld [vmem:[%s2] sm:$0x1]
    %v53 = vlaneseq
    %v54 = vshrl.u32 %v53, 7
    %v55 = vsub.s32 0, %v54
    %v56 = vrot.slane %v51, %v55
    %58 = vmatprep.subr.mxu0 0.0
    %59 = vmatpush1.msra.mxu0 %v35
    %60 = vmatprep.subr.mxu0 0.0
    %61 = vmatpush1.msra.mxu0 %v36
    %62 = vmatprep.subr.mxu0 0.0
    %63 = vmatpush1.msra.mxu0 %v37
    %64 = vmatprep.subr.mxu0 0.0
    %65 = vmatpush1.msra.mxu0 %v38
    %66 = vmatprep.subr.mxu0 0.0
    %67 = vmatpush1.msra.mxu0 %v39
    %68 = vmatprep.subr.mxu0 0.0
    %69 = vmatpush1.msra.mxu0 %v40
    %70 = vmatprep.subr.mxu0 0.0
    %71 = vmatpush1.msra.mxu0 %v41
    %72 = vmatprep.subr.mxu0 0.0
    %73 = vmatpush1.msra.mxu0 %v42
    %74 = vmatprep.subr.mxu0 0.0
    %75 = vmatpush1.msra.mxu0 %v43
    %76 = vmatprep.subr.mxu0 0.0
    %77 = vmatpush1.msra.mxu0 %v44
    %78 = vmatprep.subr.mxu0 0.0
    %79 = vmatpush1.msra.mxu0 %v45
    %80 = vmatprep.subr.mxu0 0.0
    %81 = vmatpush1.msra.mxu0 %v46
    %82 = vmatprep.subr.mxu0 0.0
    %83 = vmatpush1.msra.mxu0 %v47
    %84 = vmatprep.subr.mxu0 0.0
    %85 = vmatpush1.msra.mxu0 %v48
    %86 = vmatprep.subr.mxu0 0.0
    %87 = vmatpush1.msra.mxu0 %v49
    %88 = vmatprep.subr.mxu0 0.0
    %89 = vmatpush1.msra.mxu0 %v50
    %90 = vmatprep.subr.mxu0 0.0
    %91 = vmatpush1.msra.mxu0 0.0
    %92 = vmatprep.subr.mxu0 0.0
    %93 = vmatpush1.msra.mxu0 0.0
    %94 = vmatprep.subr.mxu0 0.0
    %95 = vmatpush1.msra.mxu0 0.0
    %96 = vmatprep.subr.mxu0 0.0
    %97 = vmatpush1.msra.mxu0 0.0
    %98 = vmatprep.subr.mxu0 0.0
    %99 = vmatpush1.msra.mxu0 0.0
    %100 = vmatprep.subr.mxu0 0.0
    %101 = vmatpush1.msra.mxu0 0.0
    %102 = vmatprep.subr.mxu0 0.0
    %103 = vmatpush1.msra.mxu0 0.0
    %104 = vmatprep.subr.mxu0 0.0
    %105 = vmatpush1.msra.mxu0 0.0
    %106 = vmatprep.subr.mxu0 0.0
    %107 = vmatpush1.msra.mxu0 0.0
    %108 = vmatprep.subr.mxu0 0.0
    %109 = vmatpush1.msra.mxu0 0.0
    %110 = vmatprep.subr.mxu0 0.0
    %111 = vmatpush1.msra.mxu0 0.0
    %112 = vmatprep.subr.mxu0 0.0
    %113 = vmatpush1.msra.mxu0 0.0
    %114 = vmatprep.subr.mxu0 0.0
    %115 = vmatpush1.msra.mxu0 0.0
    %116 = vmatprep.subr.mxu0 0.0
    %117 = vmatpush1.msra.mxu0 0.0
    %118 = vmatprep.subr.mxu0 0.0
    %119 = vmatpush1.msra.mxu0 0.0
    %120 = vmatprep.subr.mxu0 0.0
    %121 = vmatpush1.msra.mxu0 0.0
    %122 = vmatprep.mubr.f32.mxu0 0.0
    %123 = vmatmul.mubr.f32.gmra.mrb[0].mxu0 %v33
    %v124 = vpop.f32.mrb[0].mxu0
    %v125 = vadd.f32 %v56, %v124
    %v126 = vpop.f32.mrb[0].mxu0
    %127 = vmatprep.mubr.f32.mxu0 0.0
    %128 = vmatmul.mubr.f32.gmra.mrb[0].mxu0 %v34
    %v129 = vpop.f32.mrb[0].mxu0
    %v130 = vadd.f32 %v56, %v129
    %v131 = vpop.f32.mrb[0].mxu0
    %132 = vdwg.mxu0
    %vm133 = vcmp.gt.f32.partialorder %v125, 0.0
    %vm134 = vcmp.gt.f32.partialorder %v130, 0.0
    %v135 = vmul.f32 %v125, 0.2
    %v136 = vmul.f32 %v130, 0.2
    %v137 = vsel %vm133, %v125, %v135
    %v138 = vsel %vm134, %v130, %v136
    %v139 = vld [vmem:[%s3] sm:$0xff]
    %v140 = vld [vmem:[%s3 + $0x8] sm:$0xff]
    %v141 = vld [vmem:[%s3 + $0x10] sm:$0xff]
    %v142 = vld [vmem:[%s3 + $0x18] sm:$0xff]
    %v143 = vld [vmem:[%s4] sm:$0x1]
    %v145 = vlaneseq
    %v146 = vshrl.u32 %v145, 7
    %v147 = vsub.s32 0, %v146
    %v148 = vrot.slane %v143, %v147
    %vm150 = vcmask 261120
    %v152 = vsel %vm150, %v137, 0
    %v155 = vsel %vm150, %v138, 0
    %157 = vmatprep.subr.mxu0 0.0
    %158 = vmatpush1.msra.mxu0 %v139
    %159 = vmatprep.subr.mxu0 0.0
    %160 = vmatpush1.msra.mxu0 %v140
    %161 = vmatprep.subr.mxu0 0.0
    %162 = vmatpush1.msra.mxu0 %v141
    %163 = vmatprep.subr.mxu0 0.0
    %164 = vmatpush1.msra.mxu0 %v142
    %165 = vmatprep.subr.mxu0 0.0
    %166 = vmatpush1.msra.mxu0 0.0
    %167 = vmatprep.subr.mxu0 0.0
    %168 = vmatpush1.msra.mxu0 0.0
    %169 = vmatprep.subr.mxu0 0.0
    %170 = vmatpush1.msra.mxu0 0.0
    %171 = vmatprep.subr.mxu0 0.0
    %172 = vmatpush1.msra.mxu0 0.0
    %173 = vmatprep.subr.mxu0 0.0
    %174 = vmatpush1.msra.mxu0 0.0
    %175 = vmatprep.subr.mxu0 0.0
    %176 = vmatpush1.msra.mxu0 0.0
    %177 = vmatprep.subr.mxu0 0.0
    %178 = vmatpush1.msra.mxu0 0.0
    %179 = vmatprep.subr.mxu0 0.0
    %180 = vmatpush1.msra.mxu0 0.0
    %181 = vmatprep.subr.mxu0 0.0
    %182 = vmatpush1.msra.mxu0 0.0
    %183 = vmatprep.subr.mxu0 0.0
    %184 = vmatpush1.msra.mxu0 0.0
    %185 = vmatprep.subr.mxu0 0.0
    %186 = vmatpush1.msra.mxu0 0.0
    %187 = vmatprep.subr.mxu0 0.0
    %188 = vmatpush1.msra.mxu0 0.0
    %189 = vmatprep.subr.mxu0 0.0
    %190 = vmatpush1.msra.mxu0 0.0
    %191 = vmatprep.subr.mxu0 0.0
    %192 = vmatpush1.msra.mxu0 0.0
    %193 = vmatprep.subr.mxu0 0.0
    %194 = vmatpush1.msra.mxu0 0.0
    %195 = vmatprep.subr.mxu0 0.0
    %196 = vmatpush1.msra.mxu0 0.0
    %197 = vmatprep.subr.mxu0 0.0
    %198 = vmatpush1.msra.mxu0 0.0
    %199 = vmatprep.subr.mxu0 0.0
    %200 = vmatpush1.msra.mxu0 0.0
    %201 = vmatprep.subr.mxu0 0.0
    %202 = vmatpush1.msra.mxu0 0.0
    %203 = vmatprep.subr.mxu0 0.0
    %204 = vmatpush1.msra.mxu0 0.0
    %205 = vmatprep.subr.mxu0 0.0
    %206 = vmatpush1.msra.mxu0 0.0
    %207 = vmatprep.subr.mxu0 0.0
    %208 = vmatpush1.msra.mxu0 0.0
    %209 = vmatprep.subr.mxu0 0.0
    %210 = vmatpush1.msra.mxu0 0.0
    %211 = vmatprep.subr.mxu0 0.0
    %212 = vmatpush1.msra.mxu0 0.0
    %213 = vmatprep.subr.mxu0 0.0
    %214 = vmatpush1.msra.mxu0 0.0
    %215 = vmatprep.subr.mxu0 0.0
    %216 = vmatpush1.msra.mxu0 0.0
    %217 = vmatprep.subr.mxu0 0.0
    %218 = vmatpush1.msra.mxu0 0.0
    %219 = vmatprep.subr.mxu0 0.0
    %220 = vmatpush1.msra.mxu0 0.0
    %221 = vmatprep.mubr.f32.mxu0 0.0
    %222 = vmatmul.mubr.f32.gmra.mrb[0].mxu0 %v152
    %v223 = vpop.f32.mrb[0].mxu0
    %v224 = vadd.f32 %v148, %v223
    %v225 = vpop.f32.mrb[0].mxu0
    %226 = vmatprep.mubr.f32.mxu0 0.0
    %227 = vmatmul.mubr.f32.gmra.mrb[0].mxu0 %v155
    %v228 = vpop.f32.mrb[0].mxu0
    %v229 = vadd.f32 %v148, %v228
    %v230 = vpop.f32.mrb[0].mxu0
    %231 = vdwg.mxu0
    %vm232 = vcmp.gt.f32.partialorder %v224, 0.0
    %vm233 = vcmp.gt.f32.partialorder %v229, 0.0
    %v234 = vmul.f32 %v224, 0.2
    %v235 = vmul.f32 %v229, 0.2
    %v236 = vsel %vm232, %v224, %v234
    %v237 = vsel %vm233, %v229, %v235
    %v238 = vld [vmem:[%s5] sm:$0xff]
    %v239 = vld [vmem:[%s5 + $0x8] sm:$0xff]
    %v240 = vld [vmem:[%s6] sm:$0x1]
    %v242 = vlaneseq
    %v243 = vshrl.u32 %v242, 7
    %v244 = vsub.s32 0, %v243
    %v245 = vrot.slane %v240, %v244
    %vm247 = vcmask 130048
    %v249 = vsel %vm247, %v236, 0
    %v252 = vsel %vm247, %v237, 0
    %254 = vmatprep.subr.mxu0 0.0
    %255 = vmatpush1.msra.mxu0 %v238
    %256 = vmatprep.subr.mxu0 0.0
    %257 = vmatpush1.msra.mxu0 %v239
    %258 = vmatprep.subr.mxu0 0.0
    %259 = vmatpush1.msra.mxu0 0.0
    %260 = vmatprep.subr.mxu0 0.0
    %261 = vmatpush1.msra.mxu0 0.0
    %262 = vmatprep.subr.mxu0 0.0
    %263 = vmatpush1.msra.mxu0 0.0
    %264 = vmatprep.subr.mxu0 0.0
    %265 = vmatpush1.msra.mxu0 0.0
    %266 = vmatprep.subr.mxu0 0.0
    %267 = vmatpush1.msra.mxu0 0.0
    %268 = vmatprep.subr.mxu0 0.0
    %269 = vmatpush1.msra.mxu0 0.0
    %270 = vmatprep.subr.mxu0 0.0
    %271 = vmatpush1.msra.mxu0 0.0
    %272 = vmatprep.subr.mxu0 0.0
    %273 = vmatpush1.msra.mxu0 0.0
    %274 = vmatprep.subr.mxu0 0.0
    %275 = vmatpush1.msra.mxu0 0.0
    %276 = vmatprep.subr.mxu0 0.0
    %277 = vmatpush1.msra.mxu0 0.0
    %278 = vmatprep.subr.mxu0 0.0
    %279 = vmatpush1.msra.mxu0 0.0
    %280 = vmatprep.subr.mxu0 0.0
    %281 = vmatpush1.msra.mxu0 0.0
    %282 = vmatprep.subr.mxu0 0.0
    %283 = vmatpush1.msra.mxu0 0.0
    %284 = vmatprep.subr.mxu0 0.0
    %285 = vmatpush1.msra.mxu0 0.0
    %286 = vmatprep.subr.mxu0 0.0
    %287 = vmatpush1.msra.mxu0 0.0
    %288 = vmatprep.subr.mxu0 0.0
    %289 = vmatpush1.msra.mxu0 0.0
    %290 = vmatprep.subr.mxu0 0.0
    %291 = vmatpush1.msra.mxu0 0.0
    %292 = vmatprep.subr.mxu0 0.0
    %293 = vmatpush1.msra.mxu0 0.0
    %294 = vmatprep.subr.mxu0 0.0
    %295 = vmatpush1.msra.mxu0 0.0
    %296 = vmatprep.subr.mxu0 0.0
    %297 = vmatpush1.msra.mxu0 0.0
    %298 = vmatprep.subr.mxu0 0.0
    %299 = vmatpush1.msra.mxu0 0.0
    %300 = vmatprep.subr.mxu0 0.0
    %301 = vmatpush1.msra.mxu0 0.0
    %302 = vmatprep.subr.mxu0 0.0
    %303 = vmatpush1.msra.mxu0 0.0
    %304 = vmatprep.subr.mxu0 0.0
    %305 = vmatpush1.msra.mxu0 0.0
    %306 = vmatprep.subr.mxu0 0.0
    %307 = vmatpush1.msra.mxu0 0.0
    %308 = vmatprep.subr.mxu0 0.0
    %309 = vmatpush1.msra.mxu0 0.0
    %310 = vmatprep.subr.mxu0 0.0
    %311 = vmatpush1.msra.mxu0 0.0
    %312 = vmatprep.subr.mxu0 0.0
    %313 = vmatpush1.msra.mxu0 0.0
    %314 = vmatprep.subr.mxu0 0.0
    %315 = vmatpush1.msra.mxu0 0.0
    %316 = vmatprep.subr.mxu0 0.0
    %317 = vmatpush1.msra.mxu0 0.0
    %318 = vmatprep.mubr.f32.mxu0 0.0
    %319 = vmatmul.mubr.f32.gmra.mrb[0].mxu0 %v249
    %v320 = vpop.f32.mrb[0].mxu0
    %v321 = vadd.f32 %v245, %v320
    %v322 = vpop.f32.mrb[0].mxu0
    %323 = vmatprep.mubr.f32.mxu0 0.0
    %324 = vmatmul.mubr.f32.gmra.mrb[0].mxu0 %v252
    %v325 = vpop.f32.mrb[0].mxu0
    %v326 = vadd.f32 %v245, %v325
    %v327 = vpop.f32.mrb[0].mxu0
    %328 = vdwg.mxu0
    %vm329 = vcmp.gt.f32.partialorder %v321, 0.0
    %vm330 = vcmp.gt.f32.partialorder %v326, 0.0
    %v331 = vmul.f32 %v321, 0.2
    %v332 = vmul.f32 %v326, 0.2
    %v333 = vsel %vm329, %v321, %v331
    %v334 = vsel %vm330, %v326, %v332
    %v335 = vld [vmem:[%s7] sm:$0xff]
    %v336 = vld [vmem:[%s8] sm:$0x1]
    %v338 = vlaneseq
    %v339 = vshrl.u32 %v338, 7
    %v340 = vsub.s32 0, %v339
    %v341 = vrot.slane %v336, %v340
    %vm343 = vcmask 64512
    %v345 = vsel %vm343, %v333, 0
    %v348 = vsel %vm343, %v334, 0
    %350 = vmatprep.subr.mxu0 0.0
    %351 = vmatpush1.msra.mxu0 %v335
    %352 = vmatprep.subr.mxu0 0.0
    %353 = vmatpush1.msra.mxu0 0.0
    %354 = vmatprep.subr.mxu0 0.0
    %355 = vmatpush1.msra.mxu0 0.0
    %356 = vmatprep.subr.mxu0 0.0
    %357 = vmatpush1.msra.mxu0 0.0
    %358 = vmatprep.subr.mxu0 0.0
    %359 = vmatpush1.msra.mxu0 0.0
    %360 = vmatprep.subr.mxu0 0.0
    %361 = vmatpush1.msra.mxu0 0.0
    %362 = vmatprep.subr.mxu0 0.0
    %363 = vmatpush1.msra.mxu0 0.0
    %364 = vmatprep.subr.mxu0 0.0
    %365 = vmatpush1.msra.mxu0 0.0
    %366 = vmatprep.subr.mxu0 0.0
    %367 = vmatpush1.msra.mxu0 0.0
    %368 = vmatprep.subr.mxu0 0.0
    %369 = vmatpush1.msra.mxu0 0.0
    %370 = vmatprep.subr.mxu0 0.0
    %371 = vmatpush1.msra.mxu0 0.0
    %372 = vmatprep.subr.mxu0 0.0
    %373 = vmatpush1.msra.mxu0 0.0
    %374 = vmatprep.subr.mxu0 0.0
    %375 = vmatpush1.msra.mxu0 0.0
    %376 = vmatprep.subr.mxu0 0.0
    %377 = vmatpush1.msra.mxu0 0.0
    %378 = vmatprep.subr.mxu0 0.0
    %379 = vmatpush1.msra.mxu0 0.0
    %380 = vmatprep.subr.mxu0 0.0
    %381 = vmatpush1.msra.mxu0 0.0
    %382 = vmatprep.subr.mxu0 0.0
    %383 = vmatpush1.msra.mxu0 0.0
    %384 = vmatprep.subr.mxu0 0.0
    %385 = vmatpush1.msra.mxu0 0.0
    %386 = vmatprep.subr.mxu0 0.0
    %387 = vmatpush1.msra.mxu0 0.0
    %388 = vmatprep.subr.mxu0 0.0
    %389 = vmatpush1.msra.mxu0 0.0
    %390 = vmatprep.subr.mxu0 0.0
    %391 = vmatpush1.msra.mxu0 0.0
    %392 = vmatprep.subr.mxu0 0.0
    %393 = vmatpush1.msra.mxu0 0.0
    %394 = vmatprep.subr.mxu0 0.0
    %395 = vmatpush1.msra.mxu0 0.0
    %396 = vmatprep.subr.mxu0 0.0
    %397 = vmatpush1.msra.mxu0 0.0
    %398 = vmatprep.subr.mxu0 0.0
    %399 = vmatpush1.msra.mxu0 0.0
    %400 = vmatprep.subr.mxu0 0.0
    %401 = vmatpush1.msra.mxu0 0.0
    %402 = vmatprep.subr.mxu0 0.0
    %403 = vmatpush1.msra.mxu0 0.0
    %404 = vmatprep.subr.mxu0 0.0
    %405 = vmatpush1.msra.mxu0 0.0
    %406 = vmatprep.subr.mxu0 0.0
    %407 = vmatpush1.msra.mxu0 0.0
    %408 = vmatprep.subr.mxu0 0.0
    %409 = vmatpush1.msra.mxu0 0.0
    %410 = vmatprep.subr.mxu0 0.0
    %411 = vmatpush1.msra.mxu0 0.0
    %412 = vmatprep.subr.mxu0 0.0
    %413 = vmatpush1.msra.mxu0 0.0
    %414 = vmatprep.mubr.f32.mxu0 0.0
    %415 = vmatmul.mubr.f32.gmra.mrb[0].mxu0 %v345
    %v416 = vpop.f32.mrb[0].mxu0
    %v417 = vadd.f32 %v341, %v416
    %v418 = vpop.f32.mrb[0].mxu0
    %419 = vmatprep.mubr.f32.mxu0 0.0
    %420 = vmatmul.mubr.f32.gmra.mrb[0].mxu0 %v348
    %v421 = vpop.f32.mrb[0].mxu0
    %v422 = vadd.f32 %v341, %v421
    %v423 = vpop.f32.mrb[0].mxu0
    %424 = vdwg.mxu0
    %425 = vst [vmem:[#allocation2] sm:$0xff] %v417
    %426 = vst [vmem:[#allocation2 + $0x8] sm:$0xff] %v422
    // Predicated region
    $region38: #{tpu_custom_call.1} parent=1 // pred_check
      _
    $region39: #{tpu_custom_call.1} parent=1 // pred_check_branch
      %428 = sbr.rel (0) target = $region41
    $region40: #{tpu_custom_call.1} parent=1 // pred_region
      %s430 = ssub.s32 256, 256
      %431 = vsyncadd [#allocation3], %s430
      %s432 = sshll.u32 [#allocation2], 4
      %s433 = int_to_ptr.vmem [resolvable:$true] %s432
      %438 = dma.vmem_to_hbm [thread:$0]  %s433, 256, %s9, [#allocation3], 128, 128, 8
    $region41: #{tpu_custom_call.1} parent=1 // pred_fallthru
      _
    // Predicated region
    $region42: #{tpu_custom_call.1} parent=1 // pred_check
      _
    $region43: #{tpu_custom_call.1} parent=1 // pred_check_branch
      %440 = sbr.rel (0) target = $region45
    $region44: #{tpu_custom_call.1} parent=1 // pred_region
      %441 = dma.done [#allocation3], 256
    $region45: #{tpu_custom_call.1} parent=1 // pred_fallthru
      _
    %442 = vsyncpa [#allocation3], 1

</llo_original>
